<compile_context>
chip_gen: v7x
topology: tpu7x:2x2x1
jax: 0.10.0
libtpu: 0.0.40
codegen_flags: <defaults>
</compile_context>

<pallas_src>
import functools

import jax
import jax.numpy as jnp
from jax import lax
from jax.experimental import pallas as pl
from jax.experimental.pallas import tpu as pltpu

TEMPERATURE = 0.07
_NEG_BIG = -1e30  # large finite "minus infinity" (avoids inf-inf NaN hazards)


def _round_up(x, m):
    return ((x + m - 1) // m) * m


def _ntxent_kernel(qidx_ref, pidx_ref, q_ref, p_ref,
                   loss_ref, npos_ref,
                   neg_max, neg_sum, *, inv_temp):
    phase = pl.program_id(1)   # 0: negative stats, 1: positive terms
    kblk = pl.program_id(2)    # passage-tile index

    @pl.when(jnp.logical_and(phase == 0, kblk == 0))
    def _init():
        neg_max[...] = jnp.full_like(neg_max, _NEG_BIG)
        neg_sum[...] = jnp.zeros_like(neg_sum)
        loss_ref[...] = jnp.zeros_like(loss_ref)
        npos_ref[...] = jnp.zeros_like(npos_ref)

    # Fold temperature into the small (tq, D) query tile; keep operand dtype
    # (bf16 inputs go to the MXU un-upcast, accumulation stays f32).
    q = q_ref[...] * jnp.asarray(inv_temp, dtype=q_ref.dtype)
    p = p_ref[...]
    # A · Bᵀ by contracting the last dims directly -- no explicit transpose.
    sims = lax.dot_general(q, p, (((1,), (1,)), ((), ())),
                           preferred_element_type=jnp.float32)      # (tq, tp)

    qid = qidx_ref[...]            # (tq, 1) int32 (pad rows = -1)
    pid = pidx_ref[...]            # (1, tp) int32 (pad cols = -2)
    rel = qid == pid               # (tq, tp) positive-pair mask

    @pl.when(phase == 0)
    def _neg_stats():
        # negatives: id mismatch AND a real (non-pad) passage column.
        neg_valid = jnp.logical_and(jnp.logical_not(rel), pid >= 0)
        s_neg = jnp.where(neg_valid, sims, _NEG_BIG)
        blk_max = jnp.max(s_neg, axis=1, keepdims=True)              # (tq, 1)
        new_max = jnp.maximum(neg_max[...], blk_max)
        rescale = jnp.exp(neg_max[...] - new_max)                    # <= 1, finite
        contrib = jnp.sum(jnp.where(neg_valid, jnp.exp(s_neg - new_max), 0.0),
                          axis=1, keepdims=True)
        neg_sum[...] = rescale * neg_sum[...] + contrib
        neg_max[...] = new_max

    @pl.when(phase == 1)
    def _pos_terms():
        # loss_ij = log(1 + sum_neg exp(s_ik - s_ij)) = softplus(lse_neg_i - s_ij)
        lse_neg = neg_max[...] + jnp.log(neg_sum[...])               # -inf ok
        x = lse_neg - sims                                           # (tq, tp)
        softplus = jnp.maximum(x, 0.0) + jnp.log(1.0 + jnp.exp(-jnp.abs(x)))
        posf = rel.astype(jnp.float32)
        loss_ref[...] += jnp.sum(softplus * posf, axis=1, keepdims=True)
        npos_ref[...] += jnp.sum(posf, axis=1, keepdims=True)


def ntxent_loss(query_idx, query_rpr, passage_idx, passage_rpr,
                temperature=TEMPERATURE, tile_q=256, tile_p=512):
    nq, d = query_rpr.shape
    np_, d2 = passage_rpr.shape
    assert d == d2, "feature dims must match"

    # Tile sizes: multiples of (8, 128); shrink to the (padded) problem when small.
    tq = min(tile_q, _round_up(nq, 8))
    tp = min(tile_p, _round_up(np_, 128))
    nq_pad = _round_up(nq, tq)
    np_pad = _round_up(np_, tp)

    q = query_rpr
    p = passage_rpr
    if nq_pad != nq:
        q = jnp.pad(q, ((0, nq_pad - nq), (0, 0)))
    if np_pad != np_:
        p = jnp.pad(p, ((0, np_pad - np_), (0, 0)))

    # Pad sentinels: -1 (queries) / -2 (passages) never match real ids or each other.
    qidx = jnp.pad(query_idx.astype(jnp.int32).reshape(-1), (0, nq_pad - nq),
                   constant_values=-1).reshape(nq_pad, 1)
    pidx = jnp.pad(passage_idx.astype(jnp.int32).reshape(-1), (0, np_pad - np_),
                   constant_values=-2).reshape(1, np_pad)

    grid = (nq_pad // tq, 2, np_pad // tp)
    kernel = functools.partial(_ntxent_kernel, inv_temp=1.0 / temperature)

    cost = pl.CostEstimate(
        flops=2 * 2 * nq_pad * np_pad * d,        # Q·Pᵀ in both phases
        transcendentals=3 * nq_pad * np_pad,      # exp (phase 0) + exp, log (phase 1)
        bytes_accessed=(q.size * q.dtype.itemsize
                        + 2 * p.size * p.dtype.itemsize
                        + 4 * (qidx.size + 2 * pidx.size)
                        + 2 * nq_pad * 4),
    )

    loss_rows, npos_rows = pl.pallas_call(
        kernel,
        out_shape=(jax.ShapeDtypeStruct((nq_pad, 1), jnp.float32),
                   jax.ShapeDtypeStruct((nq_pad, 1), jnp.float32)),
        grid=grid,
        in_specs=[
            pl.BlockSpec((tq, 1), lambda i, s, k: (i, 0)),    # query ids
            pl.BlockSpec((1, tp), lambda i, s, k: (0, k)),    # passage ids
            pl.BlockSpec((tq, d), lambda i, s, k: (i, 0)),    # query reps
            pl.BlockSpec((tp, d), lambda i, s, k: (k, 0)),    # passage reps
        ],
        out_specs=(
            pl.BlockSpec((tq, 1), lambda i, s, k: (i, 0)),    # per-row loss sum
            pl.BlockSpec((tq, 1), lambda i, s, k: (i, 0)),    # per-row positive count
        ),
        scratch_shapes=[
            pltpu.VMEM((tq, 1), jnp.float32),   # running negative max
            pltpu.VMEM((tq, 1), jnp.float32),   # running negative sum-exp
        ],
        compiler_params=pltpu.CompilerParams(
            dimension_semantics=("parallel", "arbitrary", "arbitrary")),
        cost_estimate=cost,
    )(qidx, pidx, q, p)

    # MeanReducer ("pos_pair") + zero-pair guard: trivial scalar tail in plain JAX.
    total = jnp.sum(loss_rows)
    n_pos = jnp.sum(npos_rows)
    n_neg = jnp.float32(nq * np_) - n_pos
    return jnp.where(jnp.logical_and(n_pos > 0, n_neg > 0),
                     total / jnp.maximum(n_pos, 1.0),
                     jnp.float32(0.0))


def ntxent_loss_ref(query_idx, query_rpr, passage_idx, passage_rpr,
                    temperature=TEMPERATURE):
    """Pure-JAX reference (pml NTXentLoss with DotProductDistance semantics)."""
    sims = (query_rpr.astype(jnp.float32)
            @ passage_rpr.astype(jnp.float32).T) / temperature
    rel = query_idx[:, None] == passage_idx[None, :]
    pos_mask = rel.astype(jnp.float32)
    neg_mask = 1.0 - pos_mask
    big_neg = jnp.finfo(jnp.float32).min
    neg_sims = jnp.where(rel, big_neg, sims)
    neg_max = jnp.max(neg_sims, axis=1, keepdims=True)
    neg_sum = jnp.sum(jnp.exp(neg_sims - neg_max) * neg_mask, axis=1, keepdims=True)
    m = jnp.maximum(sims, neg_max)
    numerator = jnp.exp(sims - m)
    denominator = numerator + jnp.exp(neg_max - m) * neg_sum
    tiny = jnp.finfo(jnp.float32).tiny
    per_pair = -jnp.log(numerator / denominator + tiny)
    n_pos = jnp.sum(pos_mask)
    n_neg = jnp.sum(neg_mask)
    total = jnp.sum(per_pair * pos_mask)
    return jnp.where((n_pos > 0) & (n_neg > 0), total / jnp.maximum(n_pos, 1.0), 0.0)


if __name__ == "__main__":
    key = jax.random.PRNGKey(0)
    kq, kp, kq2, kp2, ki1, ki2 = jax.random.split(key, 6)

    # --- small demo-sized problem ------------------------------------------
    NQ, NP, D = 8, 8, 32
    query_rpr = 0.1 * jax.random.normal(kq, (NQ, D), dtype=jnp.float32)
    passage_rpr = 0.1 * jax.random.normal(kp, (NP, D), dtype=jnp.float32)
    query_idx = jnp.array([0, 1, 2, 3, 0, 1, 2, 3], dtype=jnp.int32)
    passage_idx = jnp.arange(NP, dtype=jnp.int32)

    loss = ntxent_loss(query_idx, query_rpr, passage_idx, passage_rpr)
    loss = jax.block_until_ready(loss)
    ref = ntxent_loss_ref(query_idx, query_rpr, passage_idx, passage_rpr)
    assert jnp.allclose(loss, ref, rtol=1e-5, atol=1e-4), (loss, ref)

    # --- larger problem exercising multi-tile grid + padding ----------------
    NQ2, NP2, D2 = 40, 200, 64
    q2 = 0.05 * jax.random.normal(kq2, (NQ2, D2), dtype=jnp.float32)
    p2 = 0.05 * jax.random.normal(kp2, (NP2, D2), dtype=jnp.float32)
    qi2 = jax.random.randint(ki1, (NQ2,), 0, 37, dtype=jnp.int32)
    pi2 = jax.random.randint(ki2, (NP2,), 0, 37, dtype=jnp.int32)

    loss2 = ntxent_loss(qi2, q2, pi2, p2, tile_q=16, tile_p=128)
    loss2 = jax.block_until_ready(loss2)
    ref2 = ntxent_loss_ref(qi2, q2, pi2, p2)
    assert jnp.allclose(loss2, ref2, rtol=1e-5, atol=1e-4), (loss2, ref2)

    print("KERNEL_OK")
</pallas_src>

<mosaic_0001>
module attributes {stable_mosaic.version = 11 : i64} {
  func.func @_ntxent_kernel(%arg0: i32, %arg1: i32, %arg2: i32, %arg3: memref<8x1xi32, #tpu.memory_space<vmem>>, %arg4: memref<1x128xi32, #tpu.memory_space<vmem>>, %arg5: memref<8x32xf32, #tpu.memory_space<vmem>>, %arg6: memref<128x32xf32, #tpu.memory_space<vmem>>, %arg7: memref<8x1xf32, #tpu.memory_space<vmem>>, %arg8: memref<8x1xf32, #tpu.memory_space<vmem>>, %arg9: memref<8x1xf32, #tpu.memory_space<vmem>>, %arg10: memref<8x1xf32, #tpu.memory_space<vmem>>) attributes {dimension_semantics = [#tpu.dimension_semantics<parallel>, #tpu.dimension_semantics<arbitrary>, #tpu.dimension_semantics<arbitrary>], iteration_bounds = array<i64: 1, 2, 1>, scalar_prefetch = 0 : i64, scratch_operands = 2 : i64, tpu.core_type = #tpu.core_type<tc>, window_params = [{transform_indices = @transform_0, window_bounds = array<i64: 8, 1>}, {transform_indices = @transform_1, window_bounds = array<i64: 1, 128>}, {transform_indices = @transform_2, window_bounds = array<i64: 8, 32>}, {transform_indices = @transform_3, window_bounds = array<i64: 128, 32>}, {transform_indices = @transform_4, window_bounds = array<i64: 8, 1>}, {transform_indices = @transform_5, window_bounds = array<i64: 8, 1>}]} {
    %c0_i32 = arith.constant 0 : i32
    %0 = arith.cmpi eq, %arg1, %c0_i32 : i32
    %c0_i32_0 = arith.constant 0 : i32
    %1 = arith.cmpi eq, %arg2, %c0_i32_0 : i32
    %2 = arith.andi %0, %1 : i1
    %3 = arith.extui %2 : i1 to i32
    %c0_i32_1 = arith.constant 0 : i32
    %4 = arith.cmpi ne, %3, %c0_i32_1 : i32
    scf.if %4 {
      %cst_13 = arith.constant -1.000000e+30 : f32
      %21 = vector.broadcast %cst_13 : f32 to vector<8x1xf32>
      %c0_14 = arith.constant 0 : index
      %c0_15 = arith.constant 0 : index
      %22 = vector.load %arg9[%c0_14, %c0_15] : memref<8x1xf32, #tpu.memory_space<vmem>>, vector<8x1xf32>
      tpu.vector_store %arg9[%c0_14, %c0_15], %21 {strides = array<i32>} : memref<8x1xf32, #tpu.memory_space<vmem>>, vector<8x1xf32>,
      %cst_16 = arith.constant 0.000000e+00 : f32
      %23 = vector.broadcast %cst_16 : f32 to vector<8x1xf32>
      %c0_17 = arith.constant 0 : index
      %c0_18 = arith.constant 0 : index
      %24 = vector.load %arg10[%c0_17, %c0_18] : memref<8x1xf32, #tpu.memory_space<vmem>>, vector<8x1xf32>
      tpu.vector_store %arg10[%c0_17, %c0_18], %23 {strides = array<i32>} : memref<8x1xf32, #tpu.memory_space<vmem>>, vector<8x1xf32>,
      %cst_19 = arith.constant 0.000000e+00 : f32
      %25 = vector.broadcast %cst_19 : f32 to vector<8x1xf32>
      %c0_20 = arith.constant 0 : index
      %c0_21 = arith.constant 0 : index
      %26 = vector.load %arg7[%c0_20, %c0_21] : memref<8x1xf32, #tpu.memory_space<vmem>>, vector<8x1xf32>
      tpu.vector_store %arg7[%c0_20, %c0_21], %25 {strides = array<i32>} : memref<8x1xf32, #tpu.memory_space<vmem>>, vector<8x1xf32>,
      %cst_22 = arith.constant 0.000000e+00 : f32
      %27 = vector.broadcast %cst_22 : f32 to vector<8x1xf32>
      %c0_23 = arith.constant 0 : index
      %c0_24 = arith.constant 0 : index
      %28 = vector.load %arg8[%c0_23, %c0_24] : memref<8x1xf32, #tpu.memory_space<vmem>>, vector<8x1xf32>
      tpu.vector_store %arg8[%c0_23, %c0_24], %27 {strides = array<i32>} : memref<8x1xf32, #tpu.memory_space<vmem>>, vector<8x1xf32>,
    } else {
    }
    %c0 = arith.constant 0 : index
    %c0_2 = arith.constant 0 : index
    %5 = vector.load %arg5[%c0, %c0_2] : memref<8x32xf32, #tpu.memory_space<vmem>>, vector<8x32xf32>
    %cst = arith.constant 14.2857141 : f32
    %6 = vector.broadcast %cst : f32 to vector<8x32xf32>
    %7 = arith.mulf %5, %6 : vector<8x32xf32>
    %c0_3 = arith.constant 0 : index
    %c0_4 = arith.constant 0 : index
    %8 = vector.load %arg6[%c0_3, %c0_4] : memref<128x32xf32, #tpu.memory_space<vmem>>, vector<128x32xf32>
    %cst_5 = arith.constant dense<0.000000e+00> : vector<8x128xf32>
    %9 = tpu.matmul %7, %8, %cst_5 {dimension_numbers = #tpu.dot_dimension_numbers<[1], [1], [0], [0], [0, 0, 1, 0], [], []>} : vector<8x32xf32>, vector<128x32xf32>, vector<8x128xf32> -> vector<8x128xf32>
    %c0_6 = arith.constant 0 : index
    %c0_7 = arith.constant 0 : index
    %10 = vector.load %arg3[%c0_6, %c0_7] : memref<8x1xi32, #tpu.memory_space<vmem>>, vector<8x1xi32>
    %c0_8 = arith.constant 0 : index
    %c0_9 = arith.constant 0 : index
    %11 = vector.load %arg4[%c0_8, %c0_9] : memref<1x128xi32, #tpu.memory_space<vmem>>, vector<1x128xi32>
    %12 = vector.broadcast %10 : vector<8x1xi32> to vector<8x128xi32>
    %13 = vector.broadcast %11 : vector<1x128xi32> to vector<8x128xi32>
    %14 = arith.cmpi eq, %12, %13 : vector<8x128xi32>
    %c0_i32_10 = arith.constant 0 : i32
    %15 = arith.cmpi eq, %arg1, %c0_i32_10 : i32
    %16 = arith.extui %15 : i1 to i32
    %c0_i32_11 = arith.constant 0 : i32
    %17 = arith.cmpi ne, %16, %c0_i32_11 : i32
    scf.if %17 {
      %cst_13 = arith.constant dense<true> : vector<8x128xi1>
      %21 = arith.xori %14, %cst_13 : vector<8x128xi1>
      %c0_i32_14 = arith.constant 0 : i32
      %22 = vector.broadcast %c0_i32_14 : i32 to vector<1x128xi32>
      %23 = arith.cmpi sge, %11, %22 : vector<1x128xi32>
      %24 = vector.broadcast %23 : vector<1x128xi1> to vector<8x128xi1>
      %25 = arith.andi %21, %24 : vector<8x128xi1>
      %cst_15 = arith.constant -1.000000e+30 : f32
      %26 = vector.broadcast %cst_15 : f32 to vector<8x128xf32>
      %27 = arith.select %25, %9, %26 : vector<8x128xi1>, vector<8x128xf32>
      %cst_16 = arith.constant dense<0xFF800000> : vector<8xf32>
      %28 = vector.multi_reduction <maximumf>, %27, %cst_16 [1] : vector<8x128xf32> to vector<8xf32>
      %29 = vector.shape_cast %28 : vector<8xf32> to vector<8x1xf32>
      %c0_17 = arith.constant 0 : index
      %c0_18 = arith.constant 0 : index
      %30 = vector.load %arg9[%c0_17, %c0_18] : memref<8x1xf32, #tpu.memory_space<vmem>>, vector<8x1xf32>
      %31 = arith.maximumf %30, %29 : vector<8x1xf32>
      %c0_19 = arith.constant 0 : index
      %c0_20 = arith.constant 0 : index
      %32 = vector.load %arg9[%c0_19, %c0_20] : memref<8x1xf32, #tpu.memory_space<vmem>>, vector<8x1xf32>
      %33 = arith.subf %32, %31 : vector<8x1xf32>
      %34 = math.exp %33 : vector<8x1xf32>
      %35 = vector.broadcast %31 : vector<8x1xf32> to vector<8x128xf32>
      %36 = arith.subf %27, %35 : vector<8x128xf32>
      %37 = math.exp %36 : vector<8x128xf32>
      %cst_21 = arith.constant 0.000000e+00 : f32
      %38 = vector.broadcast %cst_21 : f32 to vector<8x128xf32>
      %39 = arith.select %25, %37, %38 : vector<8x128xi1>, vector<8x128xf32>
      %cst_22 = arith.constant dense<0.000000e+00> : vector<8xf32>
      %40 = vector.multi_reduction <add>, %39, %cst_22 [1] : vector<8x128xf32> to vector<8xf32>
      %41 = vector.shape_cast %40 : vector<8xf32> to vector<8x1xf32>
      %c0_23 = arith.constant 0 : index
      %c0_24 = arith.constant 0 : index
      %42 = vector.load %arg10[%c0_23, %c0_24] : memref<8x1xf32, #tpu.memory_space<vmem>>, vector<8x1xf32>
      %43 = arith.mulf %34, %42 : vector<8x1xf32>
      %44 = arith.addf %43, %41 : vector<8x1xf32>
      %c0_25 = arith.constant 0 : index
      %c0_26 = arith.constant 0 : index
      %45 = vector.load %arg10[%c0_25, %c0_26] : memref<8x1xf32, #tpu.memory_space<vmem>>, vector<8x1xf32>
      tpu.vector_store %arg10[%c0_25, %c0_26], %44 {strides = array<i32>} : memref<8x1xf32, #tpu.memory_space<vmem>>, vector<8x1xf32>,
      %c0_27 = arith.constant 0 : index
      %c0_28 = arith.constant 0 : index
      %46 = vector.load %arg9[%c0_27, %c0_28] : memref<8x1xf32, #tpu.memory_space<vmem>>, vector<8x1xf32>
      tpu.vector_store %arg9[%c0_27, %c0_28], %31 {strides = array<i32>} : memref<8x1xf32, #tpu.memory_space<vmem>>, vector<8x1xf32>,
    } else {
    }
    %c1_i32 = arith.constant 1 : i32
    %18 = arith.cmpi eq, %arg1, %c1_i32 : i32
    %19 = arith.extui %18 : i1 to i32
    %c0_i32_12 = arith.constant 0 : i32
    %20 = arith.cmpi ne, %19, %c0_i32_12 : i32
    scf.if %20 {
      %c0_13 = arith.constant 0 : index
      %c0_14 = arith.constant 0 : index
      %21 = vector.load %arg9[%c0_13, %c0_14] : memref<8x1xf32, #tpu.memory_space<vmem>>, vector<8x1xf32>
      %c0_15 = arith.constant 0 : index
      %c0_16 = arith.constant 0 : index
      %22 = vector.load %arg10[%c0_15, %c0_16] : memref<8x1xf32, #tpu.memory_space<vmem>>, vector<8x1xf32>
      %23 = math.log %22 : vector<8x1xf32>
      %24 = arith.addf %21, %23 : vector<8x1xf32>
      %25 = vector.broadcast %24 : vector<8x1xf32> to vector<8x128xf32>
      %26 = arith.subf %25, %9 : vector<8x128xf32>
      %cst_17 = arith.constant 0.000000e+00 : f32
      %27 = vector.broadcast %cst_17 : f32 to vector<8x128xf32>
      %28 = arith.maximumf %26, %27 : vector<8x128xf32>
      %29 = math.absf %26 : vector<8x128xf32>
      %cst_18 = arith.constant 0.000000e+00 : f32
      %30 = vector.broadcast %cst_18 : f32 to vector<8x128xf32>
      %31 = arith.subf %30, %29 : vector<8x128xf32>
      %32 = math.exp %31 : vector<8x128xf32>
      %cst_19 = arith.constant 1.000000e+00 : f32
      %33 = vector.broadcast %cst_19 : f32 to vector<8x128xf32>
      %34 = arith.addf %33, %32 : vector<8x128xf32>
      %35 = math.log %34 : vector<8x128xf32>
      %36 = arith.addf %28, %35 : vector<8x128xf32>
      %37 = arith.extui %14 : vector<8x128xi1> to vector<8x128xi32>
      %38 = arith.sitofp %37 : vector<8x128xi32> to vector<8x128xf32>
      %c0_20 = arith.constant 0 : index
      %c0_21 = arith.constant 0 : index
      %39 = vector.load %arg7[%c0_20, %c0_21] : memref<8x1xf32, #tpu.memory_space<vmem>>, vector<8x1xf32>
      %40 = arith.mulf %36, %38 : vector<8x128xf32>
      %cst_22 = arith.constant dense<0.000000e+00> : vector<8xf32>
      %41 = vector.multi_reduction <add>, %40, %cst_22 [1] : vector<8x128xf32> to vector<8xf32>
      %42 = vector.shape_cast %41 : vector<8xf32> to vector<8x1xf32>
      %43 = arith.addf %39, %42 : vector<8x1xf32>
      %c0_23 = arith.constant 0 : index
      %c0_24 = arith.constant 0 : index
      %44 = vector.load %arg7[%c0_23, %c0_24] : memref<8x1xf32, #tpu.memory_space<vmem>>, vector<8x1xf32>
      tpu.vector_store %arg7[%c0_23, %c0_24], %43 {strides = array<i32>} : memref<8x1xf32, #tpu.memory_space<vmem>>, vector<8x1xf32>,
      %c0_25 = arith.constant 0 : index
      %c0_26 = arith.constant 0 : index
      %45 = vector.load %arg8[%c0_25, %c0_26] : memref<8x1xf32, #tpu.memory_space<vmem>>, vector<8x1xf32>
      %cst_27 = arith.constant dense<0.000000e+00> : vector<8xf32>
      %46 = vector.multi_reduction <add>, %38, %cst_27 [1] : vector<8x128xf32> to vector<8xf32>
      %47 = vector.shape_cast %46 : vector<8xf32> to vector<8x1xf32>
      %48 = arith.addf %45, %47 : vector<8x1xf32>
      %c0_28 = arith.constant 0 : index
      %c0_29 = arith.constant 0 : index
      %49 = vector.load %arg8[%c0_28, %c0_29] : memref<8x1xf32, #tpu.memory_space<vmem>>, vector<8x1xf32>
      tpu.vector_store %arg8[%c0_28, %c0_29], %48 {strides = array<i32>} : memref<8x1xf32, #tpu.memory_space<vmem>>, vector<8x1xf32>,
    } else {
    }
    return
  }
  func.func @transform_0(%arg0: i32, %arg1: i32, %arg2: i32) -> (i32, i32) {
    %c0_i32 = arith.constant 0 : i32
    %c0_i32_0 = arith.constant 0 : i32
    return %arg0, %c0_i32 : i32, i32
  }
  func.func @transform_1(%arg0: i32, %arg1: i32, %arg2: i32) -> (i32, i32) {
    %c0_i32 = arith.constant 0 : i32
    %c0_i32_0 = arith.constant 0 : i32
    return %c0_i32, %arg2 : i32, i32
  }
  func.func @transform_2(%arg0: i32, %arg1: i32, %arg2: i32) -> (i32, i32) {
    %c0_i32 = arith.constant 0 : i32
    %c0_i32_0 = arith.constant 0 : i32
    return %arg0, %c0_i32 : i32, i32
  }
  func.func @transform_3(%arg0: i32, %arg1: i32, %arg2: i32) -> (i32, i32) {
    %c0_i32 = arith.constant 0 : i32
    %c0_i32_0 = arith.constant 0 : i32
    return %arg2, %c0_i32 : i32, i32
  }
  func.func @transform_4(%arg0: i32, %arg1: i32, %arg2: i32) -> (i32, i32) {
    %c0_i32 = arith.constant 0 : i32
    %c0_i32_0 = arith.constant 0 : i32
    return %arg0, %c0_i32 : i32, i32
  }
  func.func @transform_5(%arg0: i32, %arg1: i32, %arg2: i32) -> (i32, i32) {
    %c0_i32 = arith.constant 0 : i32
    %c0_i32_0 = arith.constant 0 : i32
    return %arg0, %c0_i32 : i32, i32
  }
}

</mosaic_0001>

<llo_original>
// kernel: tpu_custom_call.1
$region0: #{tpu_custom_call.1}
  #allocation0 [shape = 'u32[]', space=smem, size = 0x4, offset = 0x4, fixed_abs, tag = 'smem constant byte address 0x4 - core index']
  #allocation1 [shape = 'u32[144,128]{1,0:T(1,128)}', space=vmem, size = 0x12000, scoped, tag = 'internal scratch']
  #allocation2 [shape = 'f32[8,1]{1,0:T(8,128)}', space=vmem, size = 0x1000, scoped, tag = 'scratch operand']
  #allocation3 [shape = 'f32[8,1]{1,0:T(8,128)}', space=vmem, size = 0x1000, scoped, tag = 'scratch operand']
  %s0 = inlined_call_operand.vmem [shape: s32[8,1], index: 0, kind: input, shape index: {}]
  %s1 = inlined_call_operand.vmem [shape: s32[1,128], index: 1, kind: input, shape index: {}]
  %s2 = inlined_call_operand.vmem [shape: f32[8,32], index: 2, kind: input, shape index: {}]
  %s3 = inlined_call_operand.vmem [shape: f32[128,32], index: 3, kind: input, shape index: {}]
  %s4 = inlined_call_operand.vmem [shape: f32[8,1], index: 4, kind: output, shape index: {0}]
  %s5 = inlined_call_operand.vmem [shape: f32[8,1], index: 5, kind: output, shape index: {1}]
  %6 = xla_tuple %s4, %s5
  %s7 = sld [smem:[#allocation0]]
  $region69: #{tpu_custom_call.1} parent=0
    _
  %s9 = ssub.s32 1, %s7
  %s10 = scalar_select 0, %s9, %s7
  loop: start=0, step=1, limit=4
  $region2: #{tpu_custom_call.1} parent=0 // loop_pre_header
    _
  $region3: #{tpu_custom_call.1} parent=0 // loop_header
    %s12 = sphi 0, %s16
    %p13 = scmp.ge.s32.totalorder %s12, 4
    %s19 = sphi 0, %s38
    %s20 = sphi 0, %s34
    %s21 = sphi 0, %s30
    %s22 = sphi 0, %s19
    %s23 = sphi 0, %s20
    %s24 = sphi 0, %s21
    %s25 = sphi 0, %s22
    %s26 = sphi 0, %s23
    %s27 = sphi 0, %s24
    %s41 = sphi 0, %s43
    %s44 = sphi 0, %s41
    %s45 = sphi 0, %s44
    %s61 = sphi 0, %s45
    %s67 = sphi 0, %s69
    %s70 = sphi 0, %s67
    %s71 = sphi 0, %s70
    %s87 = sphi 0, %s71
    %s93 = sphi 0, %s95
    %s96 = sphi 0, %s93
    %s97 = sphi 0, %s96
    %s113 = sphi 0, %s97
    %s119 = sphi 0, %s121
    %s122 = sphi 0, %s119
    %s123 = sphi 0, %s122
    %s139 = sphi 0, %s123
    %s145 = sphi 0, %s147
    %s148 = sphi 0, %s145
    %s149 = sphi 0, %s148
    %s165 = sphi 0, %s149
    %s171 = sphi 0, %s173
    %s174 = sphi 0, %s171
    %s175 = sphi 0, %s174
    %s191 = sphi 0, %s175
  $region4: #{tpu_custom_call.1} parent=0 // loop_header_branch
    %15 = sbr.rel (%p13) target = $region8
  $region5: #{tpu_custom_call.1} parent=0 // loop_body
    %s17 = ssub.s32 %s12, 1
    %s18 = ssub.s32 %s12, 2
    %s28 = sadd.s32 1, %s21
    %p29 = scmp.ge.s32.totalorder %s28, 1
    %s30 = scalar_select %p29, 0, %s28
    %s31 = sadd.s32 1, %s20
    %s32 = scalar_select %p29, %s31, %s20
    %p33 = scmp.ge.s32.totalorder %s32, 2
    %s34 = scalar_select %p33, 0, %s32
    %s35 = sadd.s32 1, %s19
    %s36 = scalar_select %p33, %s35, %s19
    %p37 = scmp.ge.s32.totalorder %s36, 1
    %s38 = scalar_select %p37, 0, %s36
    %s39 = ssub.s32 %s19, %s38
    %p40 = scmp.eq.s32.totalorder %s39, 0
    %s42 = sadd.s32 %s41, 1
    %s43 = scalar_select %p40, %s41, %s42
    %p46 = pneg %p40
    %p47 = scmp.eq.s32.totalorder %s12, 1
    %p48 = por %p46, %p47
    %p49 = scmp.ne.s32.totalorder %s41, %s44
    %p50 = scmp.eq.s32.totalorder %s12, 0
    %p51 = por %p49, %p50
    %p52 = scmp.ne.s32.totalorder %s41, %s44
    %p53 = scmp.eq.s32.totalorder %s17, 1
    %p54 = por %p52, %p53
    %p55 = scmp.ne.s32.totalorder %s44, %s45
    %p56 = scmp.eq.s32.totalorder %s17, 0
    %p57 = por %p55, %p56
    %p58 = scmp.ne.s32.totalorder %s44, %s45
    %p59 = scmp.eq.s32.totalorder %s18, 1
    %p60 = por %p58, %p59
    %p62 = scmp.ne.s32.totalorder %s45, %s61
    %p63 = scmp.eq.s32.totalorder %s18, 0
    %p64 = por %p62, %p63
    %s65 = ssub.s32 %s21, %s30
    %p66 = scmp.eq.s32.totalorder %s65, 0
    %s68 = sadd.s32 %s67, 1
    %s69 = scalar_select %p66, %s67, %s68
    %p72 = pneg %p66
    %p73 = scmp.eq.s32.totalorder %s12, 1
    %p74 = por %p72, %p73
    %p75 = scmp.ne.s32.totalorder %s67, %s70
    %p76 = scmp.eq.s32.totalorder %s12, 0
    %p77 = por %p75, %p76
    %p78 = scmp.ne.s32.totalorder %s67, %s70
    %p79 = scmp.eq.s32.totalorder %s17, 1
    %p80 = por %p78, %p79
    %p81 = scmp.ne.s32.totalorder %s70, %s71
    %p82 = scmp.eq.s32.totalorder %s17, 0
    %p83 = por %p81, %p82
    %p84 = scmp.ne.s32.totalorder %s70, %s71
    %p85 = scmp.eq.s32.totalorder %s18, 1
    %p86 = por %p84, %p85
    %p88 = scmp.ne.s32.totalorder %s71, %s87
    %p89 = scmp.eq.s32.totalorder %s18, 0
    %p90 = por %p88, %p89
    %s91 = ssub.s32 %s19, %s38
    %p92 = scmp.eq.s32.totalorder %s91, 0
    %s94 = sadd.s32 %s93, 1
    %s95 = scalar_select %p92, %s93, %s94
    %p98 = pneg %p92
    %p99 = scmp.eq.s32.totalorder %s12, 1
    %p100 = por %p98, %p99
    %p101 = scmp.ne.s32.totalorder %s93, %s96
    %p102 = scmp.eq.s32.totalorder %s12, 0
    %p103 = por %p101, %p102
    %p104 = scmp.ne.s32.totalorder %s93, %s96
    %p105 = scmp.eq.s32.totalorder %s17, 1
    %p106 = por %p104, %p105
    %p107 = scmp.ne.s32.totalorder %s96, %s97
    %p108 = scmp.eq.s32.totalorder %s17, 0
    %p109 = por %p107, %p108
    %p110 = scmp.ne.s32.totalorder %s96, %s97
    %p111 = scmp.eq.s32.totalorder %s18, 1
    %p112 = por %p110, %p111
    %p114 = scmp.ne.s32.totalorder %s97, %s113
    %p115 = scmp.eq.s32.totalorder %s18, 0
    %p116 = por %p114, %p115
    %s117 = ssub.s32 %s21, %s30
    %p118 = scmp.eq.s32.totalorder %s117, 0
    %s120 = sadd.s32 %s119, 1
    %s121 = scalar_select %p118, %s119, %s120
    %p124 = pneg %p118
    %p125 = scmp.eq.s32.totalorder %s12, 1
    %p126 = por %p124, %p125
    %p127 = scmp.ne.s32.totalorder %s119, %s122
    %p128 = scmp.eq.s32.totalorder %s12, 0
    %p129 = por %p127, %p128
    %p130 = scmp.ne.s32.totalorder %s119, %s122
    %p131 = scmp.eq.s32.totalorder %s17, 1
    %p132 = por %p130, %p131
    %p133 = scmp.ne.s32.totalorder %s122, %s123
    %p134 = scmp.eq.s32.totalorder %s17, 0
    %p135 = por %p133, %p134
    %p136 = scmp.ne.s32.totalorder %s122, %s123
    %p137 = scmp.eq.s32.totalorder %s18, 1
    %p138 = por %p136, %p137
    %p140 = scmp.ne.s32.totalorder %s123, %s139
    %p141 = scmp.eq.s32.totalorder %s18, 0
    %p142 = por %p140, %p141
    %s143 = ssub.s32 %s19, %s38
    %p144 = scmp.eq.s32.totalorder %s143, 0
    %s146 = sadd.s32 %s145, 1
    %s147 = scalar_select %p144, %s145, %s146
    %p150 = pneg %p144
    %p151 = scmp.eq.s32.totalorder %s12, 1
    %p152 = por %p150, %p151
    %p153 = scmp.ne.s32.totalorder %s145, %s148
    %p154 = scmp.eq.s32.totalorder %s12, 0
    %p155 = por %p153, %p154
    %p156 = scmp.ne.s32.totalorder %s145, %s148
    %p157 = scmp.eq.s32.totalorder %s17, 1
    %p158 = por %p156, %p157
    %p159 = scmp.ne.s32.totalorder %s148, %s149
    %p160 = scmp.eq.s32.totalorder %s17, 0
    %p161 = por %p159, %p160
    %p162 = scmp.ne.s32.totalorder %s148, %s149
    %p163 = scmp.eq.s32.totalorder %s18, 1
    %p164 = por %p162, %p163
    %p166 = scmp.ne.s32.totalorder %s149, %s165
    %p167 = scmp.eq.s32.totalorder %s18, 0
    %p168 = por %p166, %p167
    %s169 = ssub.s32 %s19, %s38
    %p170 = scmp.eq.s32.totalorder %s169, 0
    %s172 = sadd.s32 %s171, 1
    %s173 = scalar_select %p170, %s171, %s172
    %p176 = pneg %p170
    %p177 = scmp.eq.s32.totalorder %s12, 1
    %p178 = por %p176, %p177
    %p179 = scmp.ne.s32.totalorder %s171, %s174
    %p180 = scmp.eq.s32.totalorder %s12, 0
    %p181 = por %p179, %p180
    %p182 = scmp.ne.s32.totalorder %s171, %s174
    %p183 = scmp.eq.s32.totalorder %s17, 1
    %p184 = por %p182, %p183
    %p185 = scmp.ne.s32.totalorder %s174, %s175
    %p186 = scmp.eq.s32.totalorder %s17, 0
    %p187 = por %p185, %p186
    %p188 = scmp.ne.s32.totalorder %s174, %s175
    %p189 = scmp.eq.s32.totalorder %s18, 1
    %p190 = por %p188, %p189
    %p192 = scmp.ne.s32.totalorder %s175, %s191
    %p193 = scmp.eq.s32.totalorder %s18, 0
    %p194 = por %p192, %p193
    %p195 = scmp.le.s32.totalorder 1, %s12
    %p196 = scmp.lt.s32.totalorder %s12, 3
    %p197 = pnand %p195, %p196
    %p198 = pneg %p197
    // Predicated region
    $region9: #{tpu_custom_call.1} parent=5 // pred_check
      _
    $region10: #{tpu_custom_call.1} parent=5 // pred_check_branch
      %200 = sbr.rel (%p197) target = $region12
    $region11: #{tpu_custom_call.1} parent=5 // pred_region
      %s201 = ssub.s32 %s12, 1
      // Predicated region
      $region13: #{tpu_custom_call.1} parent=11 // pred_check
        %p202 = pneg %p57
      $region14: #{tpu_custom_call.1} parent=11 // pred_check_branch
        %204 = sbr.rel (%p202) target = $region16
      $region15: #{tpu_custom_call.1} parent=11 // pred_region
        %p205 = scmp.lt.s32.totalorder %s22, 0
        %s206 = scalar_select %p205, %s22, 0
        %s207 = smul.addr %s206, 8
        %s208 = scalar_lea.vmem %s0, %s207
      $region16: #{tpu_custom_call.1} parent=11 // pred_fallthru
        _
      // Predicated region
      $region17: #{tpu_custom_call.1} parent=11 // pred_check
        %p209 = pneg %p83
      $region18: #{tpu_custom_call.1} parent=11 // pred_check_branch
        %211 = sbr.rel (%p209) target = $region20
      $region19: #{tpu_custom_call.1} parent=11 // pred_region
        %p212 = scmp.lt.s32.totalorder %s24, 0
        %s213 = scalar_select %p212, %s24, 0
        %s214 = scalar_lea.vmem %s1, %s213
      $region20: #{tpu_custom_call.1} parent=11 // pred_fallthru
        _
      // Predicated region
      $region21: #{tpu_custom_call.1} parent=11 // pred_check
        %p215 = pneg %p109
      $region22: #{tpu_custom_call.1} parent=11 // pred_check_branch
        %217 = sbr.rel (%p215) target = $region24
      $region23: #{tpu_custom_call.1} parent=11 // pred_region
        %p218 = scmp.lt.s32.totalorder %s22, 0
        %s219 = scalar_select %p218, %s22, 0
        %s220 = smul.addr %s219, 8
        %s221 = scalar_lea.vmem %s2, %s220
      $region24: #{tpu_custom_call.1} parent=11 // pred_fallthru
        _
      // Predicated region
      $region25: #{tpu_custom_call.1} parent=11 // pred_check
        %p222 = pneg %p135
      $region26: #{tpu_custom_call.1} parent=11 // pred_check_branch
        %224 = sbr.rel (%p222) target = $region28
      $region27: #{tpu_custom_call.1} parent=11 // pred_region
        %s225 = smul.u32 16, %s24
        %p226 = scmp.lt.s32.totalorder %s225, 15
        %s227 = scalar_select %p226, %s225, 15
        %s228 = smul.addr %s227, 8
        %s229 = scalar_lea.vmem %s3, %s228
        %s230 = smul.u32 16, %s24
      $region28: #{tpu_custom_call.1} parent=11 // pred_fallthru
        _
    $region12: #{tpu_custom_call.1} parent=5 // pred_fallthru
      _
    %p231 = scmp.lt.s32.totalorder %s12, 2
    // Predicated region
    $region29: #{tpu_custom_call.1} parent=5 // pred_check
      %p232 = pneg %p231
    $region30: #{tpu_custom_call.1} parent=5 // pred_check_branch
      %234 = sbr.rel (%p232) target = $region32
    $region31: #{tpu_custom_call.1} parent=5 // pred_region
      _
    $region32: #{tpu_custom_call.1} parent=5 // pred_fallthru
      _
    %p235 = scmp.le.s32.totalorder 1, %s12
    %p236 = scmp.lt.s32.totalorder %s12, 3
    %p237 = pnand %p235, %p236
    %p238 = pneg %p237
    // Predicated region
    $region33: #{tpu_custom_call.1} parent=5 // pred_check
      _
    $region34: #{tpu_custom_call.1} parent=5 // pred_check_branch
      %240 = sbr.rel (%p237) target = $region36
    $region35: #{tpu_custom_call.1} parent=5 // pred_region
      %s241 = ssub.s32 %s12, 1
      %p242 = scmp.lt.s32.totalorder %s22, 0
      %s243 = scalar_select %p242, %s22, 0
      %s244 = smul.addr %s243, 8
      %s245 = scalar_lea.vmem %s0, %s244
      %p246 = pneg %p57
      %p247 = pneg %p54
      %p248 = scmp.lt.s32.totalorder %s24, 0
      %s249 = scalar_select %p248, %s24, 0
      %s250 = scalar_lea.vmem %s1, %s249
      %p251 = pneg %p83
      %p252 = pneg %p80
      %p253 = scmp.lt.s32.totalorder %s22, 0
      %s254 = scalar_select %p253, %s22, 0
      %s255 = smul.addr %s254, 8
      %s256 = scalar_lea.vmem %s2, %s255
      %p257 = pneg %p109
      %p258 = pneg %p106
      %s259 = smul.u32 16, %s24
      %p260 = scmp.lt.s32.totalorder %s259, 15
      %s261 = scalar_select %p260, %s259, 15
      %s262 = smul.addr %s261, 8
      %s263 = scalar_lea.vmem %s3, %s262
      %p264 = pneg %p135
      %p265 = pneg %p132
      %p266 = pneg %p161
      %p267 = pneg %p158
      %p268 = scmp.lt.s32.totalorder %s22, 0
      %s269 = scalar_select %p268, %s22, 0
      %s270 = smul.addr %s269, 8
      %s271 = scalar_lea.vmem %s4, %s270
      %p272 = pneg %p187
      %p273 = pneg %p184
      %p274 = scmp.lt.s32.totalorder %s22, 0
      %s275 = scalar_select %p274, %s22, 0
      %s276 = smul.addr %s275, 8
      %s277 = scalar_lea.vmem %s5, %s276
      %p278 = scmp.lt.s32.totalorder %s22, 0
      %s279 = scalar_select %p278, %s22, 0
      %s280 = smul.addr %s279, 8
      %s281 = scalar_lea.vmem %s0, %s280
      %p282 = scmp.lt.s32.totalorder %s24, 0
      %s283 = scalar_select %p282, %s24, 0
      %s284 = scalar_lea.vmem %s1, %s283
      %p285 = scmp.lt.s32.totalorder %s22, 0
      %s286 = scalar_select %p285, %s22, 0
      %s287 = smul.addr %s286, 8
      %s288 = scalar_lea.vmem %s2, %s287
      %s289 = smul.u32 16, %s24
      %p290 = scmp.lt.s32.totalorder %s289, 15
      %s291 = scalar_select %p290, %s289, 15
      %s292 = smul.addr %s291, 8
      %s293 = scalar_lea.vmem %s3, %s292
      %s294 = smul.u32 16, %s24
      %p295 = scmp.lt.s32.totalorder %s22, 0
      %s296 = scalar_select %p295, %s22, 0
      %s297 = smul.addr %s296, 8
      %s298 = scalar_lea.vmem %s4, %s297
      %p299 = scmp.lt.s32.totalorder %s22, 0
      %s300 = scalar_select %p299, %s22, 0
      %s301 = smul.addr %s300, 8
      %s302 = scalar_lea.vmem %s5, %s301
      %p303 = scmp.eq.s32.totalorder %s23, 0
      %p304 = scmp.eq.s32.totalorder %s24, 0
      %p305 = pnand %p303, %p304
      %p306 = pneg %p305
      // Predicated region
      $region37: #{tpu_custom_call.1} parent=35 // pred_check
        _
      $region38: #{tpu_custom_call.1} parent=35 // pred_check_branch
        %308 = sbr.rel (%p305) target = $region40
      $region39: #{tpu_custom_call.1} parent=35 // pred_region
        %vm309 = vcmask 7168
        %310 = vst.msk [vmem:[#allocation2] sm:$0xff] %vm309, -1e+30
        %311 = vst.msk [vmem:[#allocation3] sm:$0xff] %vm309, 0.0
        %312 = vst.msk [vmem:[%s298] sm:$0xff] %vm309, 0.0
        %313 = vst.msk [vmem:[%s302] sm:$0xff] %vm309, 0.0
      $region40: #{tpu_custom_call.1} parent=35 // pred_fallthru
        _
      %v314 = vld [vmem:[%s288] sm:$0xff]
      %v315 = vmul.f32 %v314, 14.285714
      %v316 = vld [vmem:[%s293] sm:$0xff]
      %v317 = vld [vmem:[%s293 + $0x8] sm:$0xff]
      %v318 = vld [vmem:[%s293 + $0x10] sm:$0xff]
      %v319 = vld [vmem:[%s293 + $0x18] sm:$0xff]
      %v320 = vld [vmem:[%s293 + $0x20] sm:$0xff]
      %v321 = vld [vmem:[%s293 + $0x28] sm:$0xff]
      %v322 = vld [vmem:[%s293 + $0x30] sm:$0xff]
      %v323 = vld [vmem:[%s293 + $0x38] sm:$0xff]
      %v324 = vld [vmem:[%s293 + $0x40] sm:$0xff]
      %v325 = vld [vmem:[%s293 + $0x48] sm:$0xff]
      %v326 = vld [vmem:[%s293 + $0x50] sm:$0xff]
      %v327 = vld [vmem:[%s293 + $0x58] sm:$0xff]
      %v328 = vld [vmem:[%s293 + $0x60] sm:$0xff]
      %v329 = vld [vmem:[%s293 + $0x68] sm:$0xff]
      %v330 = vld [vmem:[%s293 + $0x70] sm:$0xff]
      %v331 = vld [vmem:[%s293 + $0x78] sm:$0xff]
      %vm332 = vcmask 261120
      %v334 = vsel %vm332, %v315, 0
      %v337 = vsel %vm332, %v316, 0
      %v340 = vsel %vm332, %v317, 0
      %v343 = vsel %vm332, %v318, 0
      %v346 = vsel %vm332, %v319, 0
      %v349 = vsel %vm332, %v320, 0
      %v352 = vsel %vm332, %v321, 0
      %v355 = vsel %vm332, %v322, 0
      %v358 = vsel %vm332, %v323, 0
      %v361 = vsel %vm332, %v324, 0
      %v364 = vsel %vm332, %v325, 0
      %v367 = vsel %vm332, %v326, 0
      %v370 = vsel %vm332, %v327, 0
      %v373 = vsel %vm332, %v328, 0
      %v376 = vsel %vm332, %v329, 0
      %v379 = vsel %vm332, %v330, 0
      %v382 = vsel %vm332, %v331, 0
      %384 = vmatprep.subr.mxu0 0.0
      %385 = vmatpush1.xpose.msra.mxu0 %v337
      %386 = vmatprep.subr.mxu0 0.0
      %387 = vmatpush1.xpose.msra.mxu0 %v340
      %388 = vmatprep.subr.mxu0 0.0
      %389 = vmatpush1.xpose.msra.mxu0 %v343
      %390 = vmatprep.subr.mxu0 0.0
      %391 = vmatpush1.xpose.msra.mxu0 %v346
      %392 = vmatprep.subr.mxu0 0.0
      %393 = vmatpush1.xpose.msra.mxu0 %v349
      %394 = vmatprep.subr.mxu0 0.0
      %395 = vmatpush1.xpose.msra.mxu0 %v352
      %396 = vmatprep.subr.mxu0 0.0
      %397 = vmatpush1.xpose.msra.mxu0 %v355
      %398 = vmatprep.subr.mxu0 0.0
      %399 = vmatpush1.xpose.msra.mxu0 %v358
      %400 = vmatprep.subr.mxu0 0.0
      %401 = vmatpush1.xpose.msra.mxu0 %v361
      %402 = vmatprep.subr.mxu0 0.0
      %403 = vmatpush1.xpose.msra.mxu0 %v364
      %404 = vmatprep.subr.mxu0 0.0
      %405 = vmatpush1.xpose.msra.mxu0 %v367
      %406 = vmatprep.subr.mxu0 0.0
      %407 = vmatpush1.xpose.msra.mxu0 %v370
      %408 = vmatprep.subr.mxu0 0.0
      %409 = vmatpush1.xpose.msra.mxu0 %v373
      %410 = vmatprep.subr.mxu0 0.0
      %411 = vmatpush1.xpose.msra.mxu0 %v376
      %412 = vmatprep.subr.mxu0 0.0
      %413 = vmatpush1.xpose.msra.mxu0 %v379
      %414 = vmatprep.subr.mxu0 0.0
      %415 = vmatpush1.xpose.msra.mxu0 %v382
      %416 = vmatprep.subr.mxu0 0.0
      %417 = vmatpush1.xpose.msra.mxu0 0.0
      %418 = vmatprep.subr.mxu0 0.0
      %419 = vmatpush1.xpose.msra.mxu0 0.0
      %420 = vmatprep.subr.mxu0 0.0
      %421 = vmatpush1.xpose.msra.mxu0 0.0
      %422 = vmatprep.subr.mxu0 0.0
      %423 = vmatpush1.xpose.msra.mxu0 0.0
      %424 = vmatprep.subr.mxu0 0.0
      %425 = vmatpush1.xpose.msra.mxu0 0.0
      %426 = vmatprep.subr.mxu0 0.0
      %427 = vmatpush1.xpose.msra.mxu0 0.0
      %428 = vmatprep.subr.mxu0 0.0
      %429 = vmatpush1.xpose.msra.mxu0 0.0
      %430 = vmatprep.subr.mxu0 0.0
      %431 = vmatpush1.xpose.msra.mxu0 0.0
      %432 = vmatprep.subr.mxu0 0.0
      %433 = vmatpush1.xpose.msra.mxu0 0.0
      %434 = vmatprep.subr.mxu0 0.0
      %435 = vmatpush1.xpose.msra.mxu0 0.0
      %436 = vmatprep.subr.mxu0 0.0
      %437 = vmatpush1.xpose.msra.mxu0 0.0
      %438 = vmatprep.subr.mxu0 0.0
      %439 = vmatpush1.xpose.msra.mxu0 0.0
      %440 = vmatprep.subr.mxu0 0.0
      %441 = vmatpush1.xpose.msra.mxu0 0.0
      %442 = vmatprep.subr.mxu0 0.0
      %443 = vmatpush1.xpose.msra.mxu0 0.0
      %444 = vmatprep.subr.mxu0 0.0
      %445 = vmatpush1.xpose.msra.mxu0 0.0
      %446 = vmatprep.subr.mxu0 0.0
      %447 = vmatpush1.xpose.msra.mxu0 0.0
      %448 = vmatprep.mubr.f32.mxu0 0.0
      %449 = vmatmul.mubr.f32.gmra.mrb[0].mxu0 %v334
      %v450 = vpop.f32.mrb[0].mxu0
      %v451 = vadd.f32 0.0, %v450
      %v452 = vpop.f32.mrb[0].mxu0
      %453 = vdwg.mxu0
      %v454 = vld [vmem:[%s281] sm:$0xff]
      %v455 = vld [vmem:[%s284] sm:$0x1]
      %456 = vset.pattern.permute.xlu0 0
      %457 = vperm.xlu0 %456, %v454
      %v458 = vpop.permute.xlu0 %457
      %v459 = vlaneseq
      %v460 = vshrl.u32 %v459, 7
      %v461 = vsub.s32 0, %v460
      %v462 = vrot.slane %v455, %v461
      %vm463 = vcmp.eq.s32.totalorder %v458, %v462
      // Predicated region
      $region41: #{tpu_custom_call.1} parent=35 // pred_check
        %p464 = pneg %p303
      $region42: #{tpu_custom_call.1} parent=35 // pred_check_branch
        %466 = sbr.rel (%p464) target = $region44
      $region43: #{tpu_custom_call.1} parent=35 // pred_region
        %vm467 = vmxor %vm463, 1
        %vm468 = vcmp.ge.s32.totalorder %v455, 0
        %v469 = vsel %vm468, 1, 0
        %v470 = vlaneseq
        %v471 = vshrl.u32 %v470, 7
        %v472 = vsub.s32 0, %v471
        %v473 = vrot.slane %v469, %v472
        %vm474 = vcmp.eq.s32.totalorder %v473, 1
        %vm475 = vmand %vm467, %vm474
        %v476 = vsel %vm475, %v451, -1e+30
        %477 = vmax.xlane.f32.xlu0 %v476
        %v478 = vpop.xlane.xlu0 %477
        %v479 = vld [vmem:[#allocation2] sm:$0xff]
        %v480 = vmax.f32 %v479, %v478
        %v481 = vsub.f32 %v479, %v480
        %v482 = vmul.f32 %v481, 1.442695
        %v483 = vpow.pop %v482
        %485 = vset.pattern.permute.xlu0 0
        %486 = vperm.xlu0 %485, %v480
        %v487 = vpop.permute.xlu0 %486
        %v489 = vsub.f32 %v476, %v487
        %v490 = vmul.f32 %v489, 1.442695
        %v491 = vpow.pop %v490
        %v492 = vsel %vm475, %v491, 0.0
        %493 = vadd.xlane.f32.xlu0 %v492
        %v494 = vpop.xlane.xlu0 %493
        %v495 = vld [vmem:[#allocation3] sm:$0xff]
        %v496 = vmul.f32 %v483, %v495
        %v497 = vadd.f32 %v496, %v494
        %vm498 = vcmask 7168
        %499 = vst.msk [vmem:[#allocation3] sm:$0xff] %vm498, %v497
        %500 = vst.msk [vmem:[#allocation2] sm:$0xff] %vm498, %v480
      $region44: #{tpu_custom_call.1} parent=35 // pred_fallthru
        _
      %p501 = scmp.eq.s32.totalorder %s23, 1
      // Predicated region
      $region45: #{tpu_custom_call.1} parent=35 // pred_check
        %p502 = pneg %p501
      $region46: #{tpu_custom_call.1} parent=35 // pred_check_branch
        %504 = sbr.rel (%p502) target = $region48
      $region47: #{tpu_custom_call.1} parent=35 // pred_region
        %v505 = vld [vmem:[#allocation2] sm:$0xff]
        %v506 = vld [vmem:[#allocation3] sm:$0xff]
        %v507 = vlog2.pop %v506
        %v508 = vmul.f32 %v507, 0.6931472
        %v509 = vadd.f32 %v505, %v508
        %511 = vset.pattern.permute.xlu0 0
        %512 = vperm.xlu0 %511, %v509
        %v513 = vpop.permute.xlu0 %512
        %v515 = vsub.f32 %v513, %v451
        %v516 = vmax.f32 %v515, 0.0
        %v517 = vand.u32 2147483647, %v515
        %v518 = vsub.f32 0.0, %v517
        %v519 = vmul.f32 %v518, 1.442695
        %v520 = vpow.pop %v519
        %v521 = vadd.f32 %v520, 1.0
        %v522 = vlog2.pop %v521
        %v523 = vmul.f32 %v522, 0.6931472
        %v524 = vadd.f32 %v516, %v523
        %v525 = vsel %vm463, 1, 0
        %v526 = vcvt.s32.f32 %v525
        %v527 = vld [vmem:[%s298] sm:$0xff]
        %v528 = vmul.f32 %v524, %v526
        %529 = vadd.xlane.f32.xlu0 %v528
        %v530 = vpop.xlane.xlu0 %529
        %v531 = vadd.f32 %v527, %v530
        %vm532 = vcmask 7168
        %533 = vst.msk [vmem:[%s298] sm:$0xff] %vm532, %v531
        %v534 = vld [vmem:[%s302] sm:$0xff]
        %535 = vadd.xlane.f32.xlu0 %v526
        %v536 = vpop.xlane.xlu0 %535
        %v537 = vadd.f32 %v534, %v536
        %538 = vst.msk [vmem:[%s302] sm:$0xff] %vm532, %v537
      $region48: #{tpu_custom_call.1} parent=35 // pred_fallthru
        _
      %p539 = scmp.lt.s32.totalorder %s22, 0
      %s540 = scalar_select %p539, %s22, 0
      %s541 = smul.addr %s540, 8
      %s542 = scalar_lea.vmem %s4, %s541
      %p543 = scmp.lt.s32.totalorder %s22, 0
      %s544 = scalar_select %p543, %s22, 0
      %s545 = smul.addr %s544, 8
      %s546 = scalar_lea.vmem %s5, %s545
      // Predicated region
      $region49: #{tpu_custom_call.1} parent=35 // pred_check
        %p547 = pneg %p158
      $region50: #{tpu_custom_call.1} parent=35 // pred_check_branch
        %549 = sbr.rel (%p547) target = $region52
      $region51: #{tpu_custom_call.1} parent=35 // pred_region
        _
      $region52: #{tpu_custom_call.1} parent=35 // pred_fallthru
        _
      // Predicated region
      $region53: #{tpu_custom_call.1} parent=35 // pred_check
        %p550 = pneg %p184
      $region54: #{tpu_custom_call.1} parent=35 // pred_check_branch
        %552 = sbr.rel (%p550) target = $region56
      $region55: #{tpu_custom_call.1} parent=35 // pred_region
        _
      $region56: #{tpu_custom_call.1} parent=35 // pred_fallthru
        _
      // Predicated region
      $region57: #{tpu_custom_call.1} parent=35 // pred_check
        %p553 = pneg %p158
      $region58: #{tpu_custom_call.1} parent=35 // pred_check_branch
        %555 = sbr.rel (%p553) target = $region60
      $region59: #{tpu_custom_call.1} parent=35 // pred_region
        %p556 = scmp.lt.s32.totalorder %s22, 0
        %s557 = scalar_select %p556, %s22, 0
        %s558 = smul.addr %s557, 8
        %s559 = scalar_lea.vmem %s4, %s558
      $region60: #{tpu_custom_call.1} parent=35 // pred_fallthru
        _
      // Predicated region
      $region61: #{tpu_custom_call.1} parent=35 // pred_check
        %p560 = pneg %p184
      $region62: #{tpu_custom_call.1} parent=35 // pred_check_branch
        %562 = sbr.rel (%p560) target = $region64
      $region63: #{tpu_custom_call.1} parent=35 // pred_region
        %p563 = scmp.lt.s32.totalorder %s22, 0
        %s564 = scalar_select %p563, %s22, 0
        %s565 = smul.addr %s564, 8
        %s566 = scalar_lea.vmem %s5, %s565
      $region64: #{tpu_custom_call.1} parent=35 // pred_fallthru
        _
    $region36: #{tpu_custom_call.1} parent=5 // pred_fallthru
      _
    %p567 = scmp.le.s32.totalorder 2, %s12
    // Predicated region
    $region65: #{tpu_custom_call.1} parent=5 // pred_check
      %p568 = pneg %p567
    $region66: #{tpu_custom_call.1} parent=5 // pred_check_branch
      %570 = sbr.rel (%p568) target = $region68
    $region67: #{tpu_custom_call.1} parent=5 // pred_region
      %s571 = ssub.s32 %s12, 2
    $region68: #{tpu_custom_call.1} parent=5 // pred_fallthru
      _
  $region6: #{tpu_custom_call.1} parent=0 // loop_footer
    %s16 = sadd.s32 1, %s12
  $region7: #{tpu_custom_call.1} parent=0 // loop_footer_branch
    %11 = sbr.rel target = $region3
  $region8: #{tpu_custom_call.1} parent=0 // loop_exit
    _

</llo_original>
